<compile_context>
chip_gen: v5e
topology: v5e:2x2
jax: 0.10.0
libtpu: 0.0.40
codegen_flags: <defaults>
</compile_context>

<pallas_src>
import numpy as np
import jax
import jax.numpy as jnp
from jax.experimental import pallas as pl
from jax.experimental.pallas import tpu as pltpu

D_IN, D_HID, D_OUT = 39, 50, 1
D_IN_PAD, D_HID_PAD = 64, 64          # zero-padded, MXU/lane-friendly feature dims


def _grouped_mlp_kernel(ts_ref, xT_ref, w1_ref, b1_ref, w2_ref, b2_ref, w3_ref, b3_ref, o_ref):
    """One grid step = one TILE_M-atom tile of a single species.
    Layout: features on sublanes, atoms on lanes. bf16 MXU matmuls, f32 bias/SiLU."""
    del ts_ref  # species id is consumed by the index_maps only
    xT = xT_ref[...]                                                      # (64, T) bf16
    h = jnp.dot(w1_ref[0], xT, preferred_element_type=jnp.float32)        # (64, T) f32
    h = h + b1_ref[0]                                                     # lane-broadcast bias
    h = h * jax.nn.sigmoid(h)                                             # SiLU (EUP logistic)
    h = jnp.dot(w2_ref[0], h.astype(jnp.bfloat16),
                preferred_element_type=jnp.float32)
    h = h + b2_ref[0]
    h = h * jax.nn.sigmoid(h)
    # final Linear(50,1): weighted sublane reduction -> lane-dense (1, T) output row
    y = jnp.sum(h * w3_ref[0], axis=0, keepdims=True) + b3_ref[0]         # (1, T) f32
    o_ref[...] = y


def grouped_species_mlp(descT, tile_species, packed, tile_m):
    """descT: (64, M_pad) bf16, species-grouped + padded atom rows on the lane axis.
    tile_species: (num_tiles,) int32 species index per m-tile (scalar-prefetched).
    Returns (1, M_pad) f32 per-atom energies."""
    w1t, b1t, w2t, b2t, w3c, b3p = packed
    M_pad = descT.shape[1]
    num_tiles = M_pad // tile_m
    grid_spec = pltpu.PrefetchScalarGridSpec(
        num_scalar_prefetch=1,
        grid=(num_tiles,),
        in_specs=[
            pl.BlockSpec((D_IN_PAD, tile_m), lambda m, ts: (0, m)),          # descriptor tile
            pl.BlockSpec((1, D_HID_PAD, D_IN_PAD), lambda m, ts: (ts[m], 0, 0)),
            pl.BlockSpec((1, D_HID_PAD, 1), lambda m, ts: (ts[m], 0, 0)),
            pl.BlockSpec((1, D_HID_PAD, D_HID_PAD), lambda m, ts: (ts[m], 0, 0)),
            pl.BlockSpec((1, D_HID_PAD, 1), lambda m, ts: (ts[m], 0, 0)),
            pl.BlockSpec((1, D_HID_PAD, 1), lambda m, ts: (ts[m], 0, 0)),
            pl.BlockSpec((1, 1, 1), lambda m, ts: (ts[m], 0, 0)),
        ],
        out_specs=pl.BlockSpec((1, tile_m), lambda m, ts: (0, m)),           # lane-dense slab
    )
    return pl.pallas_call(
        _grouped_mlp_kernel,
        out_shape=jax.ShapeDtypeStruct((1, M_pad), jnp.float32),
        grid_spec=grid_spec,
        compiler_params=pltpu.CompilerParams(
            dimension_semantics=("parallel",),           # m-tiles split across TensorCores
            vmem_limit_bytes=64 * 1024 * 1024,           # raise toward ~100MiB on v5e/v6e w/ bigger tiles
        ),
    )(tile_species, descT, w1t, b1t, w2t, b2t, w3c, b3p)


def init_params(key, species):
    """Deterministic per-species parameters, nn.Linear-style uniform(+-1/sqrt(fan_in))."""
    S = len(species)

    def lin(k, fan_in, fan_out):
        k1, k2 = jax.random.split(k)
        bound = 1.0 / np.sqrt(fan_in)
        w = jax.random.uniform(k1, (S, fan_in, fan_out), jnp.float32, -bound, bound)
        b = jax.random.uniform(k2, (S, fan_out), jnp.float32, -bound, bound)
        return w, b

    k1, k2, k3 = jax.random.split(key, 3)
    w1, b1 = lin(k1, D_IN, D_HID)
    w2, b2 = lin(k2, D_HID, D_HID)
    w3, b3 = lin(k3, D_HID, D_OUT)
    return {"w1": w1, "b1": b1, "w2": w2, "b2": b2, "w3": w3, "b3": b3}


def pack_params(raw):
    """Transpose + zero-pad per-species weights into the kernel's lane/sublane-aligned layout."""
    w1, b1, w2, b2, w3, b3 = raw["w1"], raw["b1"], raw["w2"], raw["b2"], raw["w3"], raw["b3"]
    S = w1.shape[0]
    w1t = jnp.zeros((S, D_HID_PAD, D_IN_PAD), jnp.float32)
    w1t = w1t.at[:, :D_HID, :D_IN].set(jnp.transpose(w1, (0, 2, 1))).astype(jnp.bfloat16)
    w2t = jnp.zeros((S, D_HID_PAD, D_HID_PAD), jnp.float32)
    w2t = w2t.at[:, :D_HID, :D_HID].set(jnp.transpose(w2, (0, 2, 1))).astype(jnp.bfloat16)
    b1t = jnp.zeros((S, D_HID_PAD, 1), jnp.float32).at[:, :D_HID, 0].set(b1)
    b2t = jnp.zeros((S, D_HID_PAD, 1), jnp.float32).at[:, :D_HID, 0].set(b2)
    w3c = jnp.zeros((S, D_HID_PAD, 1), jnp.float32).at[:, :D_HID, :].set(w3)
    b3p = b3.reshape(S, 1, 1).astype(jnp.float32)
    return w1t, b1t, w2t, b2t, w3c, b3p


def _build_grouping(symbols, species, n_struct, tile_m):
    """Static (numpy) grouping metadata: species-sorted atom permutation, per-group row padding
    to a multiple of tile_m, output positions of valid rows, and per-tile species ids."""
    assert tile_m % 128 == 0, "tile_m must be a multiple of 128 (lane width)"
    symbols = np.asarray(symbols)
    perm_atoms, src_rows, out_pos, tile_species = [], [], [], []
    row0, pad_off = 0, 0
    for si, spe in enumerate(species):
        idx = np.nonzero(symbols == spe)[0].astype(np.int32)
        perm_atoms.append(idx)
        g_rows = len(idx) * n_struct
        if g_rows == 0:
            continue
        g_pad = ((g_rows + tile_m - 1) // tile_m) * tile_m
        src = np.full((g_pad,), row0, dtype=np.int32)        # pad rows -> any valid row (discarded)
        src[:g_rows] = np.arange(row0, row0 + g_rows, dtype=np.int32)
        src_rows.append(src)
        out_pos.append(np.arange(pad_off, pad_off + g_rows, dtype=np.int32))
        tile_species.extend([si] * (g_pad // tile_m))
        row0 += g_rows
        pad_off += g_pad
    return (np.concatenate(perm_atoms),
            np.concatenate(src_rows),
            np.concatenate(out_pos),
            np.asarray(tile_species, dtype=np.int32))


def forward(desc, symbols, species, packed, tile_m=1024):
    """desc: (N, A, 39) f32; symbols: (A,) static numpy species numbers; species: list of ints.
    Mirrors:  temp = [moduledict[str(spe)](desc[:, mask]) for spe in species]
              res  = cat(temp, axis=1)  -> (N, A, 1)  (atoms reordered by species).
    tile_m: atom-tile size (multiple of 128); size it for VMEM: ~4k-8k on v7x, ~8k-16k on v5e/v6e."""
    N, A, _ = desc.shape
    perm_atoms, src_rows, out_pos, tile_species = _build_grouping(symbols, species, N, tile_m)
    # species-sorted row layout: atoms (grouped by species) outer, structures inner
    rows = jnp.transpose(desc[:, perm_atoms, :], (1, 0, 2)).reshape(A * N, D_IN)
    rows = jnp.pad(rows, ((0, 0), (0, D_IN_PAD - D_IN)))           # zero-pad features 39 -> 64
    rows = rows[src_rows]                                          # static per-group tile padding
    descT = jnp.transpose(rows).astype(jnp.bfloat16)               # (64, M_pad), atoms on lanes
    out = grouped_species_mlp(descT, jnp.asarray(tile_species), packed, tile_m)   # (1, M_pad)
    out_valid = out[0, out_pos]                                    # (A*N,) valid rows, sorted order
    return jnp.transpose(out_valid.reshape(A, N))[..., None]       # (N, A, 1)


def potential(desc, symbols, species, packed, tile_m=1024):
    pots = forward(desc, symbols, species, packed, tile_m=tile_m)  # (N, A, 1)
    return jnp.sum(pots, axis=1)                                   # (N, 1)


def _reference_forward(desc, symbols, species, raw):
    """Pure-JAX f32 reference (mirrors the torch per-species MLP + cat-over-masks)."""
    symbols = np.asarray(symbols)
    pieces = []
    for si, spe in enumerate(species):
        mask = symbols == spe
        x = desc[:, mask, :]
        h = jnp.einsum("nad,dh->nah", x, raw["w1"][si]) + raw["b1"][si]
        h = h * jax.nn.sigmoid(h)
        h = jnp.einsum("nad,dh->nah", h, raw["w2"][si]) + raw["b2"][si]
        h = h * jax.nn.sigmoid(h)
        y = jnp.einsum("nad,dh->nah", h, raw["w3"][si]) + raw["b3"][si]
        pieces.append(y)
    return jnp.concatenate(pieces, axis=1)


if __name__ == "__main__":
    key = jax.random.PRNGKey(0)
    k_desc, k_par = jax.random.split(key)

    N, A = 2, 8                                   # 2 structures, 8 atoms each
    species = [1, 6]                              # e.g. H, C
    symbols = np.array([1, 6, 1, 6, 6, 1, 1, 6])  # per-atom species (static)
    tile_m = 128                                  # small demo tile; use 4k-16k for real workloads

    desc = jax.random.normal(k_desc, (N, A, D_IN), dtype=jnp.float32)
    raw = init_params(k_par, species)
    packed = pack_params(raw)

    pots = forward(desc, symbols, species, packed, tile_m=tile_m)    # (N, A, 1) per-atom energies
    pot = potential(desc, symbols, species, packed, tile_m=tile_m)   # (N, 1) total energies
    jax.block_until_ready((pots, pot))

    ref = _reference_forward(desc, symbols, species, raw)
    # loose tolerance: kernel uses bf16 matmul operands (f32 accumulation) vs the f32 reference
    np.testing.assert_allclose(np.asarray(pots), np.asarray(ref), rtol=2e-2, atol=2e-2)
    np.testing.assert_allclose(np.asarray(pot), np.asarray(jnp.sum(ref, axis=1)),
                               rtol=2e-2, atol=2e-2)

    print("KERNEL_OK")
</pallas_src>

<mosaic_0001>
module attributes {stable_mosaic.version = 11 : i64} {
  func.func @_grouped_mlp_kernel(%arg0: i32, %arg1: memref<2xi32, #tpu.memory_space<smem>>, %arg2: memref<64x128xbf16, #tpu.memory_space<vmem>>, %arg3: memref<1x64x64xbf16, #tpu.memory_space<vmem>>, %arg4: memref<1x64x1xf32, #tpu.memory_space<vmem>>, %arg5: memref<1x64x64xbf16, #tpu.memory_space<vmem>>, %arg6: memref<1x64x1xf32, #tpu.memory_space<vmem>>, %arg7: memref<1x64x1xf32, #tpu.memory_space<vmem>>, %arg8: memref<1x1x1xf32, #tpu.memory_space<vmem>>, %arg9: memref<1x128xf32, #tpu.memory_space<vmem>>) attributes {dimension_semantics = [#tpu.dimension_semantics<parallel>], iteration_bounds = array<i64: 2>, scalar_prefetch = 1 : i64, scratch_operands = 0 : i64, tpu.core_type = #tpu.core_type<tc>, window_params = [{transform_indices = @transform_0, window_bounds = array<i64: 64, 128>}, {transform_indices = @transform_1, window_bounds = array<i64: 1, 64, 64>}, {transform_indices = @transform_2, window_bounds = array<i64: 1, 64, 1>}, {transform_indices = @transform_3, window_bounds = array<i64: 1, 64, 64>}, {transform_indices = @transform_4, window_bounds = array<i64: 1, 64, 1>}, {transform_indices = @transform_5, window_bounds = array<i64: 1, 64, 1>}, {transform_indices = @transform_6, window_bounds = array<i64: 1, 1, 1>}, {transform_indices = @transform_7, window_bounds = array<i64: 1, 128>}]} {
    %c0 = arith.constant 0 : index
    %c0_0 = arith.constant 0 : index
    %0 = vector.load %arg2[%c0, %c0_0] : memref<64x128xbf16, #tpu.memory_space<vmem>>, vector<64x128xbf16>
    %c0_1 = arith.constant 0 : index
    %c0_2 = arith.constant 0 : index
    %c0_3 = arith.constant 0 : index
    %1 = vector.load %arg3[%c0_1, %c0_2, %c0_3] : memref<1x64x64xbf16, #tpu.memory_space<vmem>>, vector<1x64x64xbf16>
    %2 = vector.shape_cast %1 : vector<1x64x64xbf16> to vector<64x64xbf16>
    %cst = arith.constant dense<0.000000e+00> : vector<64x128xf32>
    %3 = tpu.matmul %2, %0, %cst {dimension_numbers = #tpu.dot_dimension_numbers<[1], [0], [0], [1], [0, 0, 1, 1], [], []>} : vector<64x64xbf16>, vector<64x128xbf16>, vector<64x128xf32> -> vector<64x128xf32>
    %c0_4 = arith.constant 0 : index
    %c0_5 = arith.constant 0 : index
    %c0_6 = arith.constant 0 : index
    %4 = vector.load %arg4[%c0_4, %c0_5, %c0_6] : memref<1x64x1xf32, #tpu.memory_space<vmem>>, vector<1x64x1xf32>
    %5 = vector.shape_cast %4 : vector<1x64x1xf32> to vector<64x1xf32>
    %6 = vector.broadcast %5 : vector<64x1xf32> to vector<64x128xf32>
    %7 = arith.addf %3, %6 : vector<64x128xf32>
    %8 = arith.negf %7 : vector<64x128xf32>
    %9 = math.exp %8 : vector<64x128xf32>
    %cst_7 = arith.constant 1.000000e+00 : f32
    %10 = vector.broadcast %cst_7 : f32 to vector<64x128xf32>
    %11 = arith.addf %10, %9 : vector<64x128xf32>
    %12 = arith.divf %10, %11 : vector<64x128xf32>
    %13 = arith.mulf %7, %12 : vector<64x128xf32>
    %c0_8 = arith.constant 0 : index
    %c0_9 = arith.constant 0 : index
    %c0_10 = arith.constant 0 : index
    %14 = vector.load %arg5[%c0_8, %c0_9, %c0_10] : memref<1x64x64xbf16, #tpu.memory_space<vmem>>, vector<1x64x64xbf16>
    %15 = vector.shape_cast %14 : vector<1x64x64xbf16> to vector<64x64xbf16>
    %16 = arith.truncf %13 : vector<64x128xf32> to vector<64x128xbf16>
    %cst_11 = arith.constant dense<0.000000e+00> : vector<64x128xf32>
    %17 = tpu.matmul %15, %16, %cst_11 {dimension_numbers = #tpu.dot_dimension_numbers<[1], [0], [0], [1], [0, 0, 1, 1], [], []>} : vector<64x64xbf16>, vector<64x128xbf16>, vector<64x128xf32> -> vector<64x128xf32>
    %c0_12 = arith.constant 0 : index
    %c0_13 = arith.constant 0 : index
    %c0_14 = arith.constant 0 : index
    %18 = vector.load %arg6[%c0_12, %c0_13, %c0_14] : memref<1x64x1xf32, #tpu.memory_space<vmem>>, vector<1x64x1xf32>
    %19 = vector.shape_cast %18 : vector<1x64x1xf32> to vector<64x1xf32>
    %20 = vector.broadcast %19 : vector<64x1xf32> to vector<64x128xf32>
    %21 = arith.addf %17, %20 : vector<64x128xf32>
    %22 = arith.negf %21 : vector<64x128xf32>
    %23 = math.exp %22 : vector<64x128xf32>
    %cst_15 = arith.constant 1.000000e+00 : f32
    %24 = vector.broadcast %cst_15 : f32 to vector<64x128xf32>
    %25 = arith.addf %24, %23 : vector<64x128xf32>
    %26 = arith.divf %24, %25 : vector<64x128xf32>
    %27 = arith.mulf %21, %26 : vector<64x128xf32>
    %c0_16 = arith.constant 0 : index
    %c0_17 = arith.constant 0 : index
    %c0_18 = arith.constant 0 : index
    %28 = vector.load %arg7[%c0_16, %c0_17, %c0_18] : memref<1x64x1xf32, #tpu.memory_space<vmem>>, vector<1x64x1xf32>
    %29 = vector.shape_cast %28 : vector<1x64x1xf32> to vector<64x1xf32>
    %30 = vector.broadcast %29 : vector<64x1xf32> to vector<64x128xf32>
    %31 = arith.mulf %27, %30 : vector<64x128xf32>
    %cst_19 = arith.constant dense<0.000000e+00> : vector<128xf32>
    %32 = vector.multi_reduction <add>, %31, %cst_19 [0] : vector<64x128xf32> to vector<128xf32>
    %33 = vector.shape_cast %32 : vector<128xf32> to vector<1x128xf32>
    %c0_20 = arith.constant 0 : index
    %c0_21 = arith.constant 0 : index
    %c0_22 = arith.constant 0 : index
    %34 = vector.load %arg8[%c0_20, %c0_21, %c0_22] : memref<1x1x1xf32, #tpu.memory_space<vmem>>, vector<1x1x1xf32>
    %35 = vector.shape_cast %34 : vector<1x1x1xf32> to vector<1x1xf32>
    %36 = vector.broadcast %35 : vector<1x1xf32> to vector<1x128xf32>
    %37 = arith.addf %33, %36 : vector<1x128xf32>
    %c0_23 = arith.constant 0 : index
    %c0_24 = arith.constant 0 : index
    %38 = vector.load %arg9[%c0_23, %c0_24] : memref<1x128xf32, #tpu.memory_space<vmem>>, vector<1x128xf32>
    tpu.vector_store %arg9[%c0_23, %c0_24], %37 {strides = array<i32>} : memref<1x128xf32, #tpu.memory_space<vmem>>, vector<1x128xf32>,
    return
  }
  func.func @transform_0(%arg0: i32, %arg1: memref<2xi32, #tpu.memory_space<smem>>) -> (i32, i32) {
    %c0_i32 = arith.constant 0 : i32
    %c0_i32_0 = arith.constant 0 : i32
    return %c0_i32, %arg0 : i32, i32
  }
  func.func @transform_1(%arg0: i32, %arg1: memref<2xi32, #tpu.memory_space<smem>>) -> (i32, i32, i32) {
    %0 = arith.index_cast %arg0 : i32 to index
    %1 = memref.load %arg1[%0] : memref<2xi32, #tpu.memory_space<smem>>
    %c0_i32 = arith.constant 0 : i32
    %c0_i32_0 = arith.constant 0 : i32
    %c0_i32_1 = arith.constant 0 : i32
    return %1, %c0_i32, %c0_i32_0 : i32, i32, i32
  }
  func.func @transform_2(%arg0: i32, %arg1: memref<2xi32, #tpu.memory_space<smem>>) -> (i32, i32, i32) {
    %0 = arith.index_cast %arg0 : i32 to index
    %1 = memref.load %arg1[%0] : memref<2xi32, #tpu.memory_space<smem>>
    %c0_i32 = arith.constant 0 : i32
    %c0_i32_0 = arith.constant 0 : i32
    %c0_i32_1 = arith.constant 0 : i32
    return %1, %c0_i32, %c0_i32_0 : i32, i32, i32
  }
  func.func @transform_3(%arg0: i32, %arg1: memref<2xi32, #tpu.memory_space<smem>>) -> (i32, i32, i32) {
    %0 = arith.index_cast %arg0 : i32 to index
    %1 = memref.load %arg1[%0] : memref<2xi32, #tpu.memory_space<smem>>
    %c0_i32 = arith.constant 0 : i32
    %c0_i32_0 = arith.constant 0 : i32
    %c0_i32_1 = arith.constant 0 : i32
    return %1, %c0_i32, %c0_i32_0 : i32, i32, i32
  }
  func.func @transform_4(%arg0: i32, %arg1: memref<2xi32, #tpu.memory_space<smem>>) -> (i32, i32, i32) {
    %0 = arith.index_cast %arg0 : i32 to index
    %1 = memref.load %arg1[%0] : memref<2xi32, #tpu.memory_space<smem>>
    %c0_i32 = arith.constant 0 : i32
    %c0_i32_0 = arith.constant 0 : i32
    %c0_i32_1 = arith.constant 0 : i32
    return %1, %c0_i32, %c0_i32_0 : i32, i32, i32
  }
  func.func @transform_5(%arg0: i32, %arg1: memref<2xi32, #tpu.memory_space<smem>>) -> (i32, i32, i32) {
    %0 = arith.index_cast %arg0 : i32 to index
    %1 = memref.load %arg1[%0] : memref<2xi32, #tpu.memory_space<smem>>
    %c0_i32 = arith.constant 0 : i32
    %c0_i32_0 = arith.constant 0 : i32
    %c0_i32_1 = arith.constant 0 : i32
    return %1, %c0_i32, %c0_i32_0 : i32, i32, i32
  }
  func.func @transform_6(%arg0: i32, %arg1: memref<2xi32, #tpu.memory_space<smem>>) -> (i32, i32, i32) {
    %0 = arith.index_cast %arg0 : i32 to index
    %1 = memref.load %arg1[%0] : memref<2xi32, #tpu.memory_space<smem>>
    %c0_i32 = arith.constant 0 : i32
    %c0_i32_0 = arith.constant 0 : i32
    %c0_i32_1 = arith.constant 0 : i32
    return %1, %c0_i32, %c0_i32_0 : i32, i32, i32
  }
  func.func @transform_7(%arg0: i32, %arg1: memref<2xi32, #tpu.memory_space<smem>>) -> (i32, i32) {
    %c0_i32 = arith.constant 0 : i32
    %c0_i32_0 = arith.constant 0 : i32
    return %c0_i32, %arg0 : i32, i32
  }
}

</mosaic_0001>

<llo_original>
// kernel: tpu_custom_call.1
$region0: #{tpu_custom_call.1}
  #allocation0 [shape = 'u32[]', space=smem, size = 0x4, offset = 0x4, fixed_abs, tag = 'smem constant byte address 0x4 - core index']
  #allocation1 [shape = 'u32[72,128]{1,0:T(1,128)}', space=vmem, size = 0x9000, scoped, tag = 'internal scratch']
  #allocation2 [shape = 's32[1]{0}', space=sflag, size = 0x4, scoped, tag = 'scoped memory for tpu_custom_call.1']
  #allocation3 [shape = 'u8[512]{0}', space=smem, size = 0x200, scoped, tag = 'prefetched SMEM operand 0']
  %s0 = inlined_call_operand.vmem [shape: s32[2], index: 0, kind: input, shape index: {}]
  %s1 = inlined_call_operand.vmem [shape: bf16[64,256], index: 1, kind: input, shape index: {}]
  %s2 = inlined_call_operand.vmem [shape: bf16[2,64,64], index: 2, kind: input, shape index: {}]
  %s3 = inlined_call_operand.vmem [shape: f32[2,64,1], index: 3, kind: input, shape index: {}]
  %s4 = inlined_call_operand.vmem [shape: bf16[2,64,64], index: 4, kind: input, shape index: {}]
  %s5 = inlined_call_operand.vmem [shape: f32[2,64,1], index: 5, kind: input, shape index: {}]
  %s6 = inlined_call_operand.vmem [shape: f32[2,64,1], index: 6, kind: input, shape index: {}]
  %s7 = inlined_call_operand.vmem [shape: f32[2,1,1], index: 7, kind: input, shape index: {}]
  %s8 = inlined_call_operand.hbm [shape: f32[1,256], index: 8, kind: output, shape index: {}]
  %s9 = sld [smem:[#allocation0]]
  $region102: #{tpu_custom_call.1} parent=0
    _
  %s11 = ssub.s32 1, %s9
  %s12 = scalar_select 0, %s11, %s9
  %s14 = sshll.u32 %s0, 4
  %s15 = int_to_ptr.vmem [resolvable:$true] %s14
  %17 = dma.vmem_to_smem %s15, 16, [#allocation3], [#allocation2]
  %19 = dma.done [#allocation2], 16
  %20 = sfence
  $region1: #{tpu_custom_call.1} parent=0
    #allocation4 [shape = 'u8[32768]{0}', space=vmem, size = 0x8000, scoped, tag = 'input window, operand 1']
    #allocation5 [shape = 'u8[1024]{0}', space=vmem, size = 0x400, scoped, tag = 'output window, operand 0']
    #allocation6 [shape = 's32[2]{0}', space=sflag, size = 0x8, scoped, tag = 'scoped memory for tpu_custom_call.1']
    %21 = vsyncpa [#allocation6], 0
    %s22 = scalar_lea.sflag [#allocation6], 1
    %23 = vsyncpa %s22, 0
    loop: start=0, step=1, limit=4
    $region2: #{tpu_custom_call.1} parent=1 // loop_pre_header
      _
    $region3: #{tpu_custom_call.1} parent=1 // loop_header
      %s25 = sphi 0, %s29
      %p26 = scmp.ge.s32.totalorder %s25, 4
      %s35 = sphi 0, %s37
      %s38 = sphi 0, %s35
      %s39 = sphi 0, %s38
      %s55 = sphi 0, %s39
      %s63 = sphi 0, %s65
      %s66 = sphi 0, %s63
      %s67 = sphi 0, %s66
      %s83 = sphi 0, %s67
      %s91 = sphi 0, %s93
      %s94 = sphi 0, %s91
      %s95 = sphi 0, %s94
      %s111 = sphi 0, %s95
      %s119 = sphi 0, %s121
      %s122 = sphi 0, %s119
      %s123 = sphi 0, %s122
      %s139 = sphi 0, %s123
      %s147 = sphi 0, %s149
      %s150 = sphi 0, %s147
      %s151 = sphi 0, %s150
      %s167 = sphi 0, %s151
      %s175 = sphi 0, %s177
      %s178 = sphi 0, %s175
      %s179 = sphi 0, %s178
      %s195 = sphi 0, %s179
      %s203 = sphi 0, %s205
      %s206 = sphi 0, %s203
      %s207 = sphi 0, %s206
      %s223 = sphi 0, %s207
      %s229 = sphi 0, %s231
      %s232 = sphi 0, %s229
      %s233 = sphi 0, %s232
      %s249 = sphi 0, %s233
    $region4: #{tpu_custom_call.1} parent=1 // loop_header_branch
      %28 = sbr.rel (%p26) target = $region8
    $region5: #{tpu_custom_call.1} parent=1 // loop_body
      %s30 = ssub.s32 %s25, 1
      %s31 = ssub.s32 %s25, 2
      %s32 = sadd.s32 %s25, 1
      %s33 = ssub.s32 %s25, %s32
      %p34 = scmp.eq.s32.totalorder %s33, 0
      %s36 = sadd.s32 %s35, 1
      %s37 = scalar_select %p34, %s35, %s36
      %p40 = pneg %p34
      %p41 = scmp.eq.s32.totalorder %s25, 1
      %p42 = por %p40, %p41
      %p43 = scmp.ne.s32.totalorder %s35, %s38
      %p44 = scmp.eq.s32.totalorder %s25, 0
      %p45 = por %p43, %p44
      %p46 = scmp.ne.s32.totalorder %s35, %s38
      %p47 = scmp.eq.s32.totalorder %s30, 1
      %p48 = por %p46, %p47
      %p49 = scmp.ne.s32.totalorder %s38, %s39
      %p50 = scmp.eq.s32.totalorder %s30, 0
      %p51 = por %p49, %p50
      %p52 = scmp.ne.s32.totalorder %s38, %s39
      %p53 = scmp.eq.s32.totalorder %s31, 1
      %p54 = por %p52, %p53
      %p56 = scmp.ne.s32.totalorder %s39, %s55
      %p57 = scmp.eq.s32.totalorder %s31, 0
      %p58 = por %p56, %p57
      %s59 = sld [smem:[#allocation3 + %s25]]
      %s60 = sld [smem:[#allocation3 + %s32]]
      %s61 = ssub.s32 %s59, %s60
      %p62 = scmp.eq.s32.totalorder %s61, 0
      %s64 = sadd.s32 %s63, 1
      %s65 = scalar_select %p62, %s63, %s64
      %p68 = pneg %p62
      %p69 = scmp.eq.s32.totalorder %s25, 1
      %p70 = por %p68, %p69
      %p71 = scmp.ne.s32.totalorder %s63, %s66
      %p72 = scmp.eq.s32.totalorder %s25, 0
      %p73 = por %p71, %p72
      %p74 = scmp.ne.s32.totalorder %s63, %s66
      %p75 = scmp.eq.s32.totalorder %s30, 1
      %p76 = por %p74, %p75
      %p77 = scmp.ne.s32.totalorder %s66, %s67
      %p78 = scmp.eq.s32.totalorder %s30, 0
      %p79 = por %p77, %p78
      %p80 = scmp.ne.s32.totalorder %s66, %s67
      %p81 = scmp.eq.s32.totalorder %s31, 1
      %p82 = por %p80, %p81
      %p84 = scmp.ne.s32.totalorder %s67, %s83
      %p85 = scmp.eq.s32.totalorder %s31, 0
      %p86 = por %p84, %p85
      %s87 = sld [smem:[#allocation3 + %s25]]
      %s88 = sld [smem:[#allocation3 + %s32]]
      %s89 = ssub.s32 %s87, %s88
      %p90 = scmp.eq.s32.totalorder %s89, 0
      %s92 = sadd.s32 %s91, 1
      %s93 = scalar_select %p90, %s91, %s92
      %p96 = pneg %p90
      %p97 = scmp.eq.s32.totalorder %s25, 1
      %p98 = por %p96, %p97
      %p99 = scmp.ne.s32.totalorder %s91, %s94
      %p100 = scmp.eq.s32.totalorder %s25, 0
      %p101 = por %p99, %p100
      %p102 = scmp.ne.s32.totalorder %s91, %s94
      %p103 = scmp.eq.s32.totalorder %s30, 1
      %p104 = por %p102, %p103
      %p105 = scmp.ne.s32.totalorder %s94, %s95
      %p106 = scmp.eq.s32.totalorder %s30, 0
      %p107 = por %p105, %p106
      %p108 = scmp.ne.s32.totalorder %s94, %s95
      %p109 = scmp.eq.s32.totalorder %s31, 1
      %p110 = por %p108, %p109
      %p112 = scmp.ne.s32.totalorder %s95, %s111
      %p113 = scmp.eq.s32.totalorder %s31, 0
      %p114 = por %p112, %p113
      %s115 = sld [smem:[#allocation3 + %s25]]
      %s116 = sld [smem:[#allocation3 + %s32]]
      %s117 = ssub.s32 %s115, %s116
      %p118 = scmp.eq.s32.totalorder %s117, 0
      %s120 = sadd.s32 %s119, 1
      %s121 = scalar_select %p118, %s119, %s120
      %p124 = pneg %p118
      %p125 = scmp.eq.s32.totalorder %s25, 1
      %p126 = por %p124, %p125
      %p127 = scmp.ne.s32.totalorder %s119, %s122
      %p128 = scmp.eq.s32.totalorder %s25, 0
      %p129 = por %p127, %p128
      %p130 = scmp.ne.s32.totalorder %s119, %s122
      %p131 = scmp.eq.s32.totalorder %s30, 1
      %p132 = por %p130, %p131
      %p133 = scmp.ne.s32.totalorder %s122, %s123
      %p134 = scmp.eq.s32.totalorder %s30, 0
      %p135 = por %p133, %p134
      %p136 = scmp.ne.s32.totalorder %s122, %s123
      %p137 = scmp.eq.s32.totalorder %s31, 1
      %p138 = por %p136, %p137
      %p140 = scmp.ne.s32.totalorder %s123, %s139
      %p141 = scmp.eq.s32.totalorder %s31, 0
      %p142 = por %p140, %p141
      %s143 = sld [smem:[#allocation3 + %s25]]
      %s144 = sld [smem:[#allocation3 + %s32]]
      %s145 = ssub.s32 %s143, %s144
      %p146 = scmp.eq.s32.totalorder %s145, 0
      %s148 = sadd.s32 %s147, 1
      %s149 = scalar_select %p146, %s147, %s148
      %p152 = pneg %p146
      %p153 = scmp.eq.s32.totalorder %s25, 1
      %p154 = por %p152, %p153
      %p155 = scmp.ne.s32.totalorder %s147, %s150
      %p156 = scmp.eq.s32.totalorder %s25, 0
      %p157 = por %p155, %p156
      %p158 = scmp.ne.s32.totalorder %s147, %s150
      %p159 = scmp.eq.s32.totalorder %s30, 1
      %p160 = por %p158, %p159
      %p161 = scmp.ne.s32.totalorder %s150, %s151
      %p162 = scmp.eq.s32.totalorder %s30, 0
      %p163 = por %p161, %p162
      %p164 = scmp.ne.s32.totalorder %s150, %s151
      %p165 = scmp.eq.s32.totalorder %s31, 1
      %p166 = por %p164, %p165
      %p168 = scmp.ne.s32.totalorder %s151, %s167
      %p169 = scmp.eq.s32.totalorder %s31, 0
      %p170 = por %p168, %p169
      %s171 = sld [smem:[#allocation3 + %s25]]
      %s172 = sld [smem:[#allocation3 + %s32]]
      %s173 = ssub.s32 %s171, %s172
      %p174 = scmp.eq.s32.totalorder %s173, 0
      %s176 = sadd.s32 %s175, 1
      %s177 = scalar_select %p174, %s175, %s176
      %p180 = pneg %p174
      %p181 = scmp.eq.s32.totalorder %s25, 1
      %p182 = por %p180, %p181
      %p183 = scmp.ne.s32.totalorder %s175, %s178
      %p184 = scmp.eq.s32.totalorder %s25, 0
      %p185 = por %p183, %p184
      %p186 = scmp.ne.s32.totalorder %s175, %s178
      %p187 = scmp.eq.s32.totalorder %s30, 1
      %p188 = por %p186, %p187
      %p189 = scmp.ne.s32.totalorder %s178, %s179
      %p190 = scmp.eq.s32.totalorder %s30, 0
      %p191 = por %p189, %p190
      %p192 = scmp.ne.s32.totalorder %s178, %s179
      %p193 = scmp.eq.s32.totalorder %s31, 1
      %p194 = por %p192, %p193
      %p196 = scmp.ne.s32.totalorder %s179, %s195
      %p197 = scmp.eq.s32.totalorder %s31, 0
      %p198 = por %p196, %p197
      %s199 = sld [smem:[#allocation3 + %s25]]
      %s200 = sld [smem:[#allocation3 + %s32]]
      %s201 = ssub.s32 %s199, %s200
      %p202 = scmp.eq.s32.totalorder %s201, 0
      %s204 = sadd.s32 %s203, 1
      %s205 = scalar_select %p202, %s203, %s204
      %p208 = pneg %p202
      %p209 = scmp.eq.s32.totalorder %s25, 1
      %p210 = por %p208, %p209
      %p211 = scmp.ne.s32.totalorder %s203, %s206
      %p212 = scmp.eq.s32.totalorder %s25, 0
      %p213 = por %p211, %p212
      %p214 = scmp.ne.s32.totalorder %s203, %s206
      %p215 = scmp.eq.s32.totalorder %s30, 1
      %p216 = por %p214, %p215
      %p217 = scmp.ne.s32.totalorder %s206, %s207
      %p218 = scmp.eq.s32.totalorder %s30, 0
      %p219 = por %p217, %p218
      %p220 = scmp.ne.s32.totalorder %s206, %s207
      %p221 = scmp.eq.s32.totalorder %s31, 1
      %p222 = por %p220, %p221
      %p224 = scmp.ne.s32.totalorder %s207, %s223
      %p225 = scmp.eq.s32.totalorder %s31, 0
      %p226 = por %p224, %p225
      %s227 = ssub.s32 %s25, %s32
      %p228 = scmp.eq.s32.totalorder %s227, 0
      %s230 = sadd.s32 %s229, 1
      %s231 = scalar_select %p228, %s229, %s230
      %p234 = pneg %p228
      %p235 = scmp.eq.s32.totalorder %s25, 1
      %p236 = por %p234, %p235
      %p237 = scmp.ne.s32.totalorder %s229, %s232
      %p238 = scmp.eq.s32.totalorder %s25, 0
      %p239 = por %p237, %p238
      %p240 = scmp.ne.s32.totalorder %s229, %s232
      %p241 = scmp.eq.s32.totalorder %s30, 1
      %p242 = por %p240, %p241
      %p243 = scmp.ne.s32.totalorder %s232, %s233
      %p244 = scmp.eq.s32.totalorder %s30, 0
      %p245 = por %p243, %p244
      %p246 = scmp.ne.s32.totalorder %s232, %s233
      %p247 = scmp.eq.s32.totalorder %s31, 1
      %p248 = por %p246, %p247
      %p250 = scmp.ne.s32.totalorder %s233, %s249
      %p251 = scmp.eq.s32.totalorder %s31, 0
      %p252 = por %p250, %p251
      %p253 = scmp.le.s32.totalorder 1, %s25
      %p254 = scmp.lt.s32.totalorder %s25, 3
      %p255 = pnand %p253, %p254
      %p256 = pneg %p255
      // Predicated region
      $region9: #{tpu_custom_call.1} parent=5 // pred_check
        _
      $region10: #{tpu_custom_call.1} parent=5 // pred_check_branch
        %258 = sbr.rel (%p255) target = $region12
      $region11: #{tpu_custom_call.1} parent=5 // pred_region
        %s259 = ssub.s32 %s25, 1
      $region12: #{tpu_custom_call.1} parent=5 // pred_fallthru
        _
      %p260 = scmp.lt.s32.totalorder %s25, 2
      // Predicated region
      $region13: #{tpu_custom_call.1} parent=5 // pred_check
        %p261 = pneg %p260
      $region14: #{tpu_custom_call.1} parent=5 // pred_check_branch
        %263 = sbr.rel (%p261) target = $region16
      $region15: #{tpu_custom_call.1} parent=5 // pred_region
        // Predicated region
        $region17: #{tpu_custom_call.1} parent=15 // pred_check
          %p264 = pneg %p45
        $region18: #{tpu_custom_call.1} parent=15 // pred_check_branch
          %266 = sbr.rel (%p264) target = $region20
        $region19: #{tpu_custom_call.1} parent=15 // pred_region
          %s267 = sand.u32 %s35, 1
          %s268 = sand.u32 %s35, 1
          %s269 = smul.addr %s268, 32
          %s270 = scalar_lea.vmem [#allocation4], %s269
          %s271 = smul.addr %s25, 4
          %s272 = scalar_lea.vmem %s1, %s271
          // Predicated region
          $region21: #{tpu_custom_call.1} parent=19 // pred_check
            _
          $region22: #{tpu_custom_call.1} parent=19 // pred_check_branch
            %274 = sbr.rel (0) target = $region24
          $region23: #{tpu_custom_call.1} parent=19 // pred_region
            // Predicated region
            $region25: #{tpu_custom_call.1} parent=23 // pred_check
              _
            $region26: #{tpu_custom_call.1} parent=23 // pred_check_branch
              %276 = sbr.rel target = $region28
            $region27: #{tpu_custom_call.1} parent=23 // pred_region
              // Predicated region
              $region40: #{tpu_custom_call.1} parent=27 // pred_check
                _
              $region41: #{tpu_custom_call.1} parent=27 // pred_check_branch
                %306 = sbr.rel (0) target = $region43
              $region42: #{tpu_custom_call.1} parent=27 // pred_region
                loop: start=0, step=1, limit=1
                $region44: #{tpu_custom_call.1} parent=42 // loop_pre_header
                  _
                $region45: #{tpu_custom_call.1} parent=42 // loop_header
                  %s308 = sphi 0, %s312
                  %p309 = scmp.ge.s32.totalorder %s308, 1
                  %s313 = sphi %s272, %s272
                  %s314 = sphi %s270, %s270
                $region46: #{tpu_custom_call.1} parent=42 // loop_header_branch
                  %311 = sbr.rel (%p309) target = $region50
                $region47: #{tpu_custom_call.1} parent=42 // loop_body
                  _
                $region48: #{tpu_custom_call.1} parent=42 // loop_footer
                  %s312 = sadd.s32 1, %s308
                $region49: #{tpu_custom_call.1} parent=42 // loop_footer_branch
                  %307 = sbr.rel target = $region45
                $region50: #{tpu_custom_call.1} parent=42 // loop_exit
                  _
                %s316 = ssub.s32 16, 1
                loop: start=0, step=1, limit=1
                $region51: #{tpu_custom_call.1} parent=42 // loop_pre_header
                  _
                $region52: #{tpu_custom_call.1} parent=42 // loop_header
                  %s318 = sphi 0, %s322
                  %p319 = scmp.ge.s32.totalorder %s318, 1
                  %s323 = sphi %s272, %s272
                  %s324 = sphi %s270, %s270
                $region53: #{tpu_custom_call.1} parent=42 // loop_header_branch
                  %321 = sbr.rel (%p319) target = $region57
                $region54: #{tpu_custom_call.1} parent=42 // loop_body
                  %v325 = vld [vmem:[%s323] sm:%s316]
                  %326 = vst [vmem:[%s324] sm:%s316] %v325
                  %v327 = vld [vmem:[%s323 + $0x8] sm:%s316]
                  %328 = vst [vmem:[%s324 + $0x4] sm:%s316] %v327
                  %v329 = vld [vmem:[%s323 + $0x10] sm:%s316]
                  %330 = vst [vmem:[%s324 + $0x8] sm:%s316] %v329
                  %v331 = vld [vmem:[%s323 + $0x18] sm:%s316]
                  %332 = vst [vmem:[%s324 + $0xc] sm:%s316] %v331
                  %v333 = vld [vmem:[%s323 + $0x20] sm:%s316]
                  %334 = vst [vmem:[%s324 + $0x10] sm:%s316] %v333
                  %v335 = vld [vmem:[%s323 + $0x28] sm:%s316]
                  %336 = vst [vmem:[%s324 + $0x14] sm:%s316] %v335
                  %v337 = vld [vmem:[%s323 + $0x30] sm:%s316]
                  %338 = vst [vmem:[%s324 + $0x18] sm:%s316] %v337
                  %v339 = vld [vmem:[%s323 + $0x38] sm:%s316]
                  %340 = vst [vmem:[%s324 + $0x1c] sm:%s316] %v339
                $region55: #{tpu_custom_call.1} parent=42 // loop_footer
                  %s322 = sadd.s32 1, %s318
                $region56: #{tpu_custom_call.1} parent=42 // loop_footer_branch
                  %317 = sbr.rel target = $region52
                $region57: #{tpu_custom_call.1} parent=42 // loop_exit
                  _
              $region43: #{tpu_custom_call.1} parent=27 // pred_fallthru
                _
            $region28: #{tpu_custom_call.1} parent=23 // pred_fallthru
              _
            // Predicated region
            $region29: #{tpu_custom_call.1} parent=23 // pred_check
              _
            $region30: #{tpu_custom_call.1} parent=23 // pred_check_branch
              %278 = sbr.rel (0) target = $region32
            $region31: #{tpu_custom_call.1} parent=23 // pred_region
              %s280 = ssub.s32 16, 1
              loop: start=0, step=1, limit=1
              $region33: #{tpu_custom_call.1} parent=31 // loop_pre_header
                _
              $region34: #{tpu_custom_call.1} parent=31 // loop_header
                %s282 = sphi 0, %s286
                %p283 = scmp.ge.s32.totalorder %s282, 1
                %s287 = sphi %s272, %s272
                %s288 = sphi %s270, %s270
              $region35: #{tpu_custom_call.1} parent=31 // loop_header_branch
                %285 = sbr.rel (%p283) target = $region39
              $region36: #{tpu_custom_call.1} parent=31 // loop_body
                %v289 = vld [vmem:[%s287] sm:%s280]
                %290 = vst [vmem:[%s288] sm:%s280] %v289
                %v291 = vld [vmem:[%s287 + $0x8] sm:%s280]
                %292 = vst [vmem:[%s288 + $0x4] sm:%s280] %v291
                %v293 = vld [vmem:[%s287 + $0x10] sm:%s280]
                %294 = vst [vmem:[%s288 + $0x8] sm:%s280] %v293
                %v295 = vld [vmem:[%s287 + $0x18] sm:%s280]
                %296 = vst [vmem:[%s288 + $0xc] sm:%s280] %v295
                %v297 = vld [vmem:[%s287 + $0x20] sm:%s280]
                %298 = vst [vmem:[%s288 + $0x10] sm:%s280] %v297
                %v299 = vld [vmem:[%s287 + $0x28] sm:%s280]
                %300 = vst [vmem:[%s288 + $0x14] sm:%s280] %v299
                %v301 = vld [vmem:[%s287 + $0x30] sm:%s280]
                %302 = vst [vmem:[%s288 + $0x18] sm:%s280] %v301
                %v303 = vld [vmem:[%s287 + $0x38] sm:%s280]
                %304 = vst [vmem:[%s288 + $0x1c] sm:%s280] %v303
              $region37: #{tpu_custom_call.1} parent=31 // loop_footer
                %s286 = sadd.s32 1, %s282
              $region38: #{tpu_custom_call.1} parent=31 // loop_footer_branch
                %281 = sbr.rel target = $region34
              $region39: #{tpu_custom_call.1} parent=31 // loop_exit
                _
            $region32: #{tpu_custom_call.1} parent=23 // pred_fallthru
              _
          $region24: #{tpu_custom_call.1} parent=19 // pred_fallthru
            _
          %341 = vnop
        $region20: #{tpu_custom_call.1} parent=15 // pred_fallthru
          _
        // Predicated region
        $region58: #{tpu_custom_call.1} parent=15 // pred_check
          %p342 = pneg %p73
        $region59: #{tpu_custom_call.1} parent=15 // pred_check_branch
          %344 = sbr.rel (%p342) target = $region61
        $region60: #{tpu_custom_call.1} parent=15 // pred_region
          %s345 = sld [smem:[#allocation3 + %s25]]
          %p346 = scmp.lt.s32.totalorder %s345, 1
          %s347 = scalar_select %p346, %s345, 1
          %s348 = smul.addr %s347, 8
          %s349 = smul.addr %s348, 4
          %s350 = scalar_lea.vmem %s2, %s349
          %s351 = sld [smem:[#allocation3 + %s25]]
        $region61: #{tpu_custom_call.1} parent=15 // pred_fallthru
          _
        // Predicated region
        $region62: #{tpu_custom_call.1} parent=15 // pred_check
          %p352 = pneg %p101
        $region63: #{tpu_custom_call.1} parent=15 // pred_check_branch
          %354 = sbr.rel (%p352) target = $region65
        $region64: #{tpu_custom_call.1} parent=15 // pred_region
          %s355 = sld [smem:[#allocation3 + %s25]]
          %p356 = scmp.lt.s32.totalorder %s355, 1
          %s357 = scalar_select %p356, %s355, 1
          %s358 = smul.addr %s357, 8
          %s359 = smul.addr %s358, 8
          %s360 = scalar_lea.vmem %s3, %s359
          %s361 = sld [smem:[#allocation3 + %s25]]
        $region65: #{tpu_custom_call.1} parent=15 // pred_fallthru
          _
        // Predicated region
        $region66: #{tpu_custom_call.1} parent=15 // pred_check
          %p362 = pneg %p129
        $region67: #{tpu_custom_call.1} parent=15 // pred_check_branch
          %364 = sbr.rel (%p362) target = $region69
        $region68: #{tpu_custom_call.1} parent=15 // pred_region
          %s365 = sld [smem:[#allocation3 + %s25]]
          %p366 = scmp.lt.s32.totalorder %s365, 1
          %s367 = scalar_select %p366, %s365, 1
          %s368 = smul.addr %s367, 8
          %s369 = smul.addr %s368, 4
          %s370 = scalar_lea.vmem %s4, %s369
          %s371 = sld [smem:[#allocation3 + %s25]]
        $region69: #{tpu_custom_call.1} parent=15 // pred_fallthru
          _
        // Predicated region
        $region70: #{tpu_custom_call.1} parent=15 // pred_check
          %p372 = pneg %p157
        $region71: #{tpu_custom_call.1} parent=15 // pred_check_branch
          %374 = sbr.rel (%p372) target = $region73
        $region72: #{tpu_custom_call.1} parent=15 // pred_region
          %s375 = sld [smem:[#allocation3 + %s25]]
          %p376 = scmp.lt.s32.totalorder %s375, 1
          %s377 = scalar_select %p376, %s375, 1
          %s378 = smul.addr %s377, 8
          %s379 = smul.addr %s378, 8
          %s380 = scalar_lea.vmem %s5, %s379
          %s381 = sld [smem:[#allocation3 + %s25]]
        $region73: #{tpu_custom_call.1} parent=15 // pred_fallthru
          _
        // Predicated region
        $region74: #{tpu_custom_call.1} parent=15 // pred_check
          %p382 = pneg %p185
        $region75: #{tpu_custom_call.1} parent=15 // pred_check_branch
          %384 = sbr.rel (%p382) target = $region77
        $region76: #{tpu_custom_call.1} parent=15 // pred_region
          %s385 = sld [smem:[#allocation3 + %s25]]
          %p386 = scmp.lt.s32.totalorder %s385, 1
          %s387 = scalar_select %p386, %s385, 1
          %s388 = smul.addr %s387, 8
          %s389 = smul.addr %s388, 8
          %s390 = scalar_lea.vmem %s6, %s389
          %s391 = sld [smem:[#allocation3 + %s25]]
        $region77: #{tpu_custom_call.1} parent=15 // pred_fallthru
          _
        // Predicated region
        $region78: #{tpu_custom_call.1} parent=15 // pred_check
          %p392 = pneg %p213
        $region79: #{tpu_custom_call.1} parent=15 // pred_check_branch
          %394 = sbr.rel (%p392) target = $region81
        $region80: #{tpu_custom_call.1} parent=15 // pred_region
          %s395 = sld [smem:[#allocation3 + %s25]]
          %p396 = scmp.lt.s32.totalorder %s395, 1
          %s397 = scalar_select %p396, %s395, 1
          %s398 = scalar_lea.vmem %s7, %s397
          %s399 = sld [smem:[#allocation3 + %s25]]
        $region81: #{tpu_custom_call.1} parent=15 // pred_fallthru
          _
      $region16: #{tpu_custom_call.1} parent=5 // pred_fallthru
        _
      %p400 = scmp.le.s32.totalorder 1, %s25
      %p401 = scmp.lt.s32.totalorder %s25, 3
      %p402 = pnand %p400, %p401
      %p403 = pneg %p402
      // Predicated region
      $region82: #{tpu_custom_call.1} parent=5 // pred_check
        _
      $region83: #{tpu_custom_call.1} parent=5 // pred_check_branch
        %405 = sbr.rel (%p402) target = $region85
      $region84: #{tpu_custom_call.1} parent=5 // pred_region
        %s406 = ssub.s32 %s25, 1
        %s407 = sand.u32 %s38, 1
        %s408 = sand.u32 %s38, 1
        %s409 = smul.addr %s408, 32
        %s410 = scalar_lea.vmem [#allocation4], %s409
        // Predicated region
        $region86: #{tpu_custom_call.1} parent=84 // pred_check
          %p411 = pneg %p51
        $region87: #{tpu_custom_call.1} parent=84 // pred_check_branch
          %413 = sbr.rel (%p411) target = $region89
        $region88: #{tpu_custom_call.1} parent=84 // pred_region
          _
        $region89: #{tpu_custom_call.1} parent=84 // pred_fallthru
          _
        %s414 = sand.u32 %s38, 1
        %s415 = sand.u32 %s38, 1
        %s416 = smul.addr %s415, 32
        %s417 = scalar_lea.vmem [#allocation4], %s416
        %p418 = pneg %p51
        %p419 = pneg %p48
        %s420 = sld [smem:[#allocation3 + %s30]]
        %p421 = scmp.lt.s32.totalorder %s420, 1
        %s422 = scalar_select %p421, %s420, 1
        %s423 = smul.addr %s422, 8
        %s424 = smul.addr %s423, 4
        %s425 = scalar_lea.vmem %s2, %s424
        %p426 = pneg %p79
        %p427 = pneg %p76
        %s428 = sld [smem:[#allocation3 + %s30]]
        %p429 = scmp.lt.s32.totalorder %s428, 1
        %s430 = scalar_select %p429, %s428, 1
        %s431 = smul.addr %s430, 8
        %s432 = smul.addr %s431, 8
        %s433 = scalar_lea.vmem %s3, %s432
        %p434 = pneg %p107
        %p435 = pneg %p104
        %s436 = sld [smem:[#allocation3 + %s30]]
        %p437 = scmp.lt.s32.totalorder %s436, 1
        %s438 = scalar_select %p437, %s436, 1
        %s439 = smul.addr %s438, 8
        %s440 = smul.addr %s439, 4
        %s441 = scalar_lea.vmem %s4, %s440
        %p442 = pneg %p135
        %p443 = pneg %p132
        %s444 = sld [smem:[#allocation3 + %s30]]
        %p445 = scmp.lt.s32.totalorder %s444, 1
        %s446 = scalar_select %p445, %s444, 1
        %s447 = smul.addr %s446, 8
        %s448 = smul.addr %s447, 8
        %s449 = scalar_lea.vmem %s5, %s448
        %p450 = pneg %p163
        %p451 = pneg %p160
        %s452 = sld [smem:[#allocation3 + %s30]]
        %p453 = scmp.lt.s32.totalorder %s452, 1
        %s454 = scalar_select %p453, %s452, 1
        %s455 = smul.addr %s454, 8
        %s456 = smul.addr %s455, 8
        %s457 = scalar_lea.vmem %s6, %s456
        %p458 = pneg %p191
        %p459 = pneg %p188
        %s460 = sld [smem:[#allocation3 + %s30]]
        %p461 = scmp.lt.s32.totalorder %s460, 1
        %s462 = scalar_select %p461, %s460, 1
        %s463 = scalar_lea.vmem %s7, %s462
        %p464 = pneg %p219
        %p465 = pneg %p216
        %p466 = pneg %p245
        %p467 = pneg %p242
        %s468 = sand.u32 %s232, 1
        %s469 = scalar_lea.sflag [#allocation6], %s468
        %s470 = sand.u32 %s232, 1
        %s471 = scalar_lea.vmem [#allocation5], %s470
        %s472 = sld [smem:[#allocation3 + %s30]]
        %p473 = scmp.lt.s32.totalorder %s472, 1
        %s474 = scalar_select %p473, %s472, 1
        %s475 = smul.addr %s474, 8
        %s476 = smul.addr %s475, 4
        %s477 = scalar_lea.vmem %s2, %s476
        %s478 = sld [smem:[#allocation3 + %s30]]
        %s479 = sld [smem:[#allocation3 + %s30]]
        %p480 = scmp.lt.s32.totalorder %s479, 1
        %s481 = scalar_select %p480, %s479, 1
        %s482 = smul.addr %s481, 8
        %s483 = smul.addr %s482, 8
        %s484 = scalar_lea.vmem %s3, %s483
        %s485 = sld [smem:[#allocation3 + %s30]]
        %s486 = sld [smem:[#allocation3 + %s30]]
        %p487 = scmp.lt.s32.totalorder %s486, 1
        %s488 = scalar_select %p487, %s486, 1
        %s489 = smul.addr %s488, 8
        %s490 = smul.addr %s489, 4
        %s491 = scalar_lea.vmem %s4, %s490
        %s492 = sld [smem:[#allocation3 + %s30]]
        %s493 = sld [smem:[#allocation3 + %s30]]
        %p494 = scmp.lt.s32.totalorder %s493, 1
        %s495 = scalar_select %p494, %s493, 1
        %s496 = smul.addr %s495, 8
        %s497 = smul.addr %s496, 8
        %s498 = scalar_lea.vmem %s5, %s497
        %s499 = sld [smem:[#allocation3 + %s30]]
        %s500 = sld [smem:[#allocation3 + %s30]]
        %p501 = scmp.lt.s32.totalorder %s500, 1
        %s502 = scalar_select %p501, %s500, 1
        %s503 = smul.addr %s502, 8
        %s504 = smul.addr %s503, 8
        %s505 = scalar_lea.vmem %s6, %s504
        %s506 = sld [smem:[#allocation3 + %s30]]
        %s507 = sld [smem:[#allocation3 + %s30]]
        %p508 = scmp.lt.s32.totalorder %s507, 1
        %s509 = scalar_select %p508, %s507, 1
        %s510 = scalar_lea.vmem %s7, %s509
        %s511 = sld [smem:[#allocation3 + %s30]]
        %v513 = vld [vmem:[%s410] sm:$0xf]
        %v514 = vld [vmem:[%s410 + $0x4] sm:$0xf]
        %v515 = vld [vmem:[%s410 + $0x8] sm:$0xf]
        %v516 = vld [vmem:[%s410 + $0xc] sm:$0xf]
        %v517 = vld [vmem:[%s410 + $0x10] sm:$0xf]
        %v518 = vld [vmem:[%s410 + $0x14] sm:$0xf]
        %v519 = vld [vmem:[%s410 + $0x18] sm:$0xf]
        %v520 = vld [vmem:[%s410 + $0x1c] sm:$0xf]
        %v521 = vld [vmem:[%s477] sm:$0xf]
        %v522 = vld [vmem:[%s477 + $0x4] sm:$0xf]
        %v523 = vld [vmem:[%s477 + $0x8] sm:$0xf]
        %v524 = vld [vmem:[%s477 + $0xc] sm:$0xf]
        %v525 = vld [vmem:[%s477 + $0x10] sm:$0xf]
        %v526 = vld [vmem:[%s477 + $0x14] sm:$0xf]
        %v527 = vld [vmem:[%s477 + $0x18] sm:$0xf]
        %v528 = vld [vmem:[%s477 + $0x1c] sm:$0xf]
        %v529 = vld [vmem:[%s484] sm:$0xff]
        %v530 = vld [vmem:[%s484 + $0x8] sm:$0xff]
        %v531 = vld [vmem:[%s484 + $0x10] sm:$0xff]
        %v532 = vld [vmem:[%s484 + $0x18] sm:$0xff]
        %v533 = vld [vmem:[%s484 + $0x20] sm:$0xff]
        %v534 = vld [vmem:[%s484 + $0x28] sm:$0xff]
        %v535 = vld [vmem:[%s484 + $0x30] sm:$0xff]
        %v536 = vld [vmem:[%s484 + $0x38] sm:$0xff]
        %538 = vset.pattern.permute.xlu0 0
        %539 = vperm.xlu0 %538, %v529
        %v540 = vpop.permute.xlu0 %539
        %543 = vset.pattern.permute.xlu0 0
        %544 = vperm.xlu0 %543, %v530
        %v545 = vpop.permute.xlu0 %544
        %548 = vset.pattern.permute.xlu0 0
        %549 = vperm.xlu0 %548, %v531
        %v550 = vpop.permute.xlu0 %549
        %553 = vset.pattern.permute.xlu0 0
        %554 = vperm.xlu0 %553, %v532
        %v555 = vpop.permute.xlu0 %554
        %558 = vset.pattern.permute.xlu0 0
        %559 = vperm.xlu0 %558, %v533
        %v560 = vpop.permute.xlu0 %559
        %563 = vset.pattern.permute.xlu0 0
        %564 = vperm.xlu0 %563, %v534
        %v565 = vpop.permute.xlu0 %564
        %568 = vset.pattern.permute.xlu0 0
        %569 = vperm.xlu0 %568, %v535
        %v570 = vpop.permute.xlu0 %569
        %573 = vset.pattern.permute.xlu0 0
        %574 = vperm.xlu0 %573, %v536
        %v575 = vpop.permute.xlu0 %574
        %v585 = vunpack.c.l.b16 %v521
        %v586 = vunpack.c.l.b16 %v522
        %v587 = vunpack.c.l.b16 %v523
        %v588 = vunpack.c.l.b16 %v524
        %v589 = vunpack.c.l.b16 %v525
        %v590 = vunpack.c.l.b16 %v526
        %v591 = vunpack.c.l.b16 %v527
        %v592 = vunpack.c.l.b16 %v528
        %v593 = vpack.c.b16 %v586, %v585
        %v594 = vpack.c.b16 %v588, %v587
        %v595 = vpack.c.b16 %v590, %v589
        %v596 = vpack.c.b16 %v592, %v591
        %v605 = vunpack.c.l.b16 %v513
        %v606 = vunpack.c.l.b16 %v514
        %v607 = vunpack.c.l.b16 %v515
        %v608 = vunpack.c.l.b16 %v516
        %v609 = vunpack.c.l.b16 %v517
        %v610 = vunpack.c.l.b16 %v518
        %v611 = vunpack.c.l.b16 %v519
        %v612 = vunpack.c.l.b16 %v520
        %v613 = vpack.c.b16 %v606, %v605
        %v614 = vpack.c.b16 %v608, %v607
        %v615 = vpack.c.b16 %v610, %v609
        %v616 = vpack.c.b16 %v612, %v611
        %vm621 = vcmask 523264
        %v623 = vsel %vm621, %v593, 0
        %v626 = vsel %vm621, %v594, 0
        %v629 = vsel %vm621, %v595, 0
        %v632 = vsel %vm621, %v596, 0
        %634 = vmatpush.bf16.msra.mxu0 0
        %635 = vmatpush.bf16.msra.mxu0 0
        %636 = vmatpush.bf16.msra.mxu0 0
        %637 = vmatpush.bf16.msra.mxu0 0
        %638 = vmatpush.bf16.msra.mxu0 %v616
        %639 = vmatpush.bf16.msra.mxu0 %v615
        %640 = vmatpush.bf16.msra.mxu0 %v614
        %641 = vmatpush.bf16.msra.mxu0 %v613
        %642 = vmatmul.bf16.gmra.mxu0 %v623
        %v643 = vpop.f32.mrf.mxu0
        %v644 = vadd.f32 %v540, %v643
        %v645 = vpop.f32.mrf.mxu0
        %v646 = vadd.f32 %v545, %v645
        %647 = vmatmul.bf16.gmra.mxu0 %v626
        %v648 = vpop.f32.mrf.mxu0
        %v649 = vadd.f32 %v550, %v648
        %v650 = vpop.f32.mrf.mxu0
        %v651 = vadd.f32 %v555, %v650
        %652 = vmatmul.bf16.gmra.mxu0 %v629
        %v653 = vpop.f32.mrf.mxu0
        %v654 = vadd.f32 %v560, %v653
        %v655 = vpop.f32.mrf.mxu0
        %v656 = vadd.f32 %v565, %v655
        %657 = vmatmul.bf16.gmra.mxu0 %v632
        %v658 = vpop.f32.mrf.mxu0
        %v659 = vadd.f32 %v570, %v658
        %v660 = vpop.f32.mrf.mxu0
        %v661 = vadd.f32 %v575, %v660
        %662 = vdwg.mxu0
        %v663 = vxor.u32 %v644, 2147483648
        %v664 = vxor.u32 %v646, 2147483648
        %v665 = vxor.u32 %v649, 2147483648
        %v666 = vxor.u32 %v651, 2147483648
        %v667 = vxor.u32 %v654, 2147483648
        %v668 = vxor.u32 %v656, 2147483648
        %v669 = vxor.u32 %v659, 2147483648
        %v670 = vxor.u32 %v661, 2147483648
        %v671 = vmul.f32 %v663, 1.442695
        %v672 = vpow.pop %v671
        %v673 = vmul.f32 %v664, 1.442695
        %v674 = vpow.pop %v673
        %v675 = vmul.f32 %v665, 1.442695
        %v676 = vpow.pop %v675
        %v677 = vmul.f32 %v666, 1.442695
        %v678 = vpow.pop %v677
        %v679 = vmul.f32 %v667, 1.442695
        %v680 = vpow.pop %v679
        %v681 = vmul.f32 %v668, 1.442695
        %v682 = vpow.pop %v681
        %v683 = vmul.f32 %v669, 1.442695
        %v684 = vpow.pop %v683
        %v685 = vmul.f32 %v670, 1.442695
        %v686 = vpow.pop %v685
        %v687 = vadd.f32 %v672, 1.0
        %v688 = vadd.f32 %v674, 1.0
        %v689 = vadd.f32 %v676, 1.0
        %v690 = vadd.f32 %v678, 1.0
        %v691 = vadd.f32 %v680, 1.0
        %v692 = vadd.f32 %v682, 1.0
        %v693 = vadd.f32 %v684, 1.0
        %v694 = vadd.f32 %v686, 1.0
        %v695 = vrcp.pop %v687
        %v696 = vmul.f32 %v687, %v695
        %v697 = vsub.f32 1.0, %v696
        %v698 = vmul.f32 %v695, %v697
        %v699 = vadd.f32 %v695, %v698
        %vm700 = vweird.f32 %v687
        %vm701 = vweird.f32 %v695
        %vm702 = vmor %vm700, %vm701
        %v703 = vsel %vm702, %v695, %v699
        %v704 = vand.u32 2147483647, %v687
        %vm705 = vcmp.eq.f32.partialorder %v704, 8.507059e+37
        %v706 = vand.u32 %v687, 2147483648
        %v707 = vor.u32 1.1754944e-38, %v706
        %v708 = vsel %vm705, %v707, %v703
        %v709 = vmul.f32 1.0, %v708
        %v710 = vrcp.pop %v688
        %v711 = vmul.f32 %v688, %v710
        %v712 = vsub.f32 1.0, %v711
        %v713 = vmul.f32 %v710, %v712
        %v714 = vadd.f32 %v710, %v713
        %vm715 = vweird.f32 %v688
        %vm716 = vweird.f32 %v710
        %vm717 = vmor %vm715, %vm716
        %v718 = vsel %vm717, %v710, %v714
        %v719 = vand.u32 2147483647, %v688
        %vm720 = vcmp.eq.f32.partialorder %v719, 8.507059e+37
        %v721 = vand.u32 %v688, 2147483648
        %v722 = vor.u32 1.1754944e-38, %v721
        %v723 = vsel %vm720, %v722, %v718
        %v724 = vmul.f32 1.0, %v723
        %v725 = vrcp.pop %v689
        %v726 = vmul.f32 %v689, %v725
        %v727 = vsub.f32 1.0, %v726
        %v728 = vmul.f32 %v725, %v727
        %v729 = vadd.f32 %v725, %v728
        %vm730 = vweird.f32 %v689
        %vm731 = vweird.f32 %v725
        %vm732 = vmor %vm730, %vm731
        %v733 = vsel %vm732, %v725, %v729
        %v734 = vand.u32 2147483647, %v689
        %vm735 = vcmp.eq.f32.partialorder %v734, 8.507059e+37
        %v736 = vand.u32 %v689, 2147483648
        %v737 = vor.u32 1.1754944e-38, %v736
        %v738 = vsel %vm735, %v737, %v733
        %v739 = vmul.f32 1.0, %v738
        %v740 = vrcp.pop %v690
        %v741 = vmul.f32 %v690, %v740
        %v742 = vsub.f32 1.0, %v741
        %v743 = vmul.f32 %v740, %v742
        %v744 = vadd.f32 %v740, %v743
        %vm745 = vweird.f32 %v690
        %vm746 = vweird.f32 %v740
        %vm747 = vmor %vm745, %vm746
        %v748 = vsel %vm747, %v740, %v744
        %v749 = vand.u32 2147483647, %v690
        %vm750 = vcmp.eq.f32.partialorder %v749, 8.507059e+37
        %v751 = vand.u32 %v690, 2147483648
        %v752 = vor.u32 1.1754944e-38, %v751
        %v753 = vsel %vm750, %v752, %v748
        %v754 = vmul.f32 1.0, %v753
        %v755 = vrcp.pop %v691
        %v756 = vmul.f32 %v691, %v755
        %v757 = vsub.f32 1.0, %v756
        %v758 = vmul.f32 %v755, %v757
        %v759 = vadd.f32 %v755, %v758
        %vm760 = vweird.f32 %v691
        %vm761 = vweird.f32 %v755
        %vm762 = vmor %vm760, %vm761
        %v763 = vsel %vm762, %v755, %v759
        %v764 = vand.u32 2147483647, %v691
        %vm765 = vcmp.eq.f32.partialorder %v764, 8.507059e+37
        %v766 = vand.u32 %v691, 2147483648
        %v767 = vor.u32 1.1754944e-38, %v766
        %v768 = vsel %vm765, %v767, %v763
        %v769 = vmul.f32 1.0, %v768
        %v770 = vrcp.pop %v692
        %v771 = vmul.f32 %v692, %v770
        %v772 = vsub.f32 1.0, %v771
        %v773 = vmul.f32 %v770, %v772
        %v774 = vadd.f32 %v770, %v773
        %vm775 = vweird.f32 %v692
        %vm776 = vweird.f32 %v770
        %vm777 = vmor %vm775, %vm776
        %v778 = vsel %vm777, %v770, %v774
        %v779 = vand.u32 2147483647, %v692
        %vm780 = vcmp.eq.f32.partialorder %v779, 8.507059e+37
        %v781 = vand.u32 %v692, 2147483648
        %v782 = vor.u32 1.1754944e-38, %v781
        %v783 = vsel %vm780, %v782, %v778
        %v784 = vmul.f32 1.0, %v783
        %v785 = vrcp.pop %v693
        %v786 = vmul.f32 %v693, %v785
        %v787 = vsub.f32 1.0, %v786
        %v788 = vmul.f32 %v785, %v787
        %v789 = vadd.f32 %v785, %v788
        %vm790 = vweird.f32 %v693
        %vm791 = vweird.f32 %v785
        %vm792 = vmor %vm790, %vm791
        %v793 = vsel %vm792, %v785, %v789
        %v794 = vand.u32 2147483647, %v693
        %vm795 = vcmp.eq.f32.partialorder %v794, 8.507059e+37
        %v796 = vand.u32 %v693, 2147483648
        %v797 = vor.u32 1.1754944e-38, %v796
        %v798 = vsel %vm795, %v797, %v793
        %v799 = vmul.f32 1.0, %v798
        %v800 = vrcp.pop %v694
        %v801 = vmul.f32 %v694, %v800
        %v802 = vsub.f32 1.0, %v801
        %v803 = vmul.f32 %v800, %v802
        %v804 = vadd.f32 %v800, %v803
        %vm805 = vweird.f32 %v694
        %vm806 = vweird.f32 %v800
        %vm807 = vmor %vm805, %vm806
        %v808 = vsel %vm807, %v800, %v804
        %v809 = vand.u32 2147483647, %v694
        %vm810 = vcmp.eq.f32.partialorder %v809, 8.507059e+37
        %v811 = vand.u32 %v694, 2147483648
        %v812 = vor.u32 1.1754944e-38, %v811
        %v813 = vsel %vm810, %v812, %v808
        %v814 = vmul.f32 1.0, %v813
        %v815 = vmul.f32 %v644, %v709
        %v816 = vmul.f32 %v646, %v724
        %v817 = vmul.f32 %v649, %v739
        %v818 = vmul.f32 %v651, %v754
        %v819 = vmul.f32 %v654, %v769
        %v820 = vmul.f32 %v656, %v784
        %v821 = vmul.f32 %v659, %v799
        %v822 = vmul.f32 %v661, %v814
        %v823 = vld [vmem:[%s491] sm:$0xf]
        %v824 = vld [vmem:[%s491 + $0x4] sm:$0xf]
        %v825 = vld [vmem:[%s491 + $0x8] sm:$0xf]
        %v826 = vld [vmem:[%s491 + $0xc] sm:$0xf]
        %v827 = vld [vmem:[%s491 + $0x10] sm:$0xf]
        %v828 = vld [vmem:[%s491 + $0x14] sm:$0xf]
        %v829 = vld [vmem:[%s491 + $0x18] sm:$0xf]
        %v830 = vld [vmem:[%s491 + $0x1c] sm:$0xf]
        %v831 = vpack.c.bf16 %v816, %v815
        %v832 = vpack.c.bf16 %v818, %v817
        %v833 = vpack.c.bf16 %v820, %v819
        %v834 = vpack.c.bf16 %v822, %v821
        %v835 = vld [vmem:[%s498] sm:$0xff]
        %v836 = vld [vmem:[%s498 + $0x8] sm:$0xff]
        %v837 = vld [vmem:[%s498 + $0x10] sm:$0xff]
        %v838 = vld [vmem:[%s498 + $0x18] sm:$0xff]
        %v839 = vld [vmem:[%s498 + $0x20] sm:$0xff]
        %v840 = vld [vmem:[%s498 + $0x28] sm:$0xff]
        %v841 = vld [vmem:[%s498 + $0x30] sm:$0xff]
        %v842 = vld [vmem:[%s498 + $0x38] sm:$0xff]
        %844 = vset.pattern.permute.xlu0 0
        %845 = vperm.xlu0 %844, %v835
        %v846 = vpop.permute.xlu0 %845
        %849 = vset.pattern.permute.xlu0 0
        %850 = vperm.xlu0 %849, %v836
        %v851 = vpop.permute.xlu0 %850
        %854 = vset.pattern.permute.xlu0 0
        %855 = vperm.xlu0 %854, %v837
        %v856 = vpop.permute.xlu0 %855
        %859 = vset.pattern.permute.xlu0 0
        %860 = vperm.xlu0 %859, %v838
        %v861 = vpop.permute.xlu0 %860
        %864 = vset.pattern.permute.xlu0 0
        %865 = vperm.xlu0 %864, %v839
        %v866 = vpop.permute.xlu0 %865
        %869 = vset.pattern.permute.xlu0 0
        %870 = vperm.xlu0 %869, %v840
        %v871 = vpop.permute.xlu0 %870
        %874 = vset.pattern.permute.xlu0 0
        %875 = vperm.xlu0 %874, %v841
        %v876 = vpop.permute.xlu0 %875
        %879 = vset.pattern.permute.xlu0 0
        %880 = vperm.xlu0 %879, %v842
        %v881 = vpop.permute.xlu0 %880
        %v891 = vunpack.c.l.b16 %v823
        %v892 = vunpack.c.l.b16 %v824
        %v893 = vunpack.c.l.b16 %v825
        %v894 = vunpack.c.l.b16 %v826
        %v895 = vunpack.c.l.b16 %v827
        %v896 = vunpack.c.l.b16 %v828
        %v897 = vunpack.c.l.b16 %v829
        %v898 = vunpack.c.l.b16 %v830
        %v899 = vpack.c.b16 %v892, %v891
        %v900 = vpack.c.b16 %v894, %v893
        %v901 = vpack.c.b16 %v896, %v895
        %v902 = vpack.c.b16 %v898, %v897
        %v904 = vsel %vm621, %v899, 0
        %v907 = vsel %vm621, %v900, 0
        %v910 = vsel %vm621, %v901, 0
        %v913 = vsel %vm621, %v902, 0
        %915 = vmatpush.bf16.msra.mxu0 0
        %916 = vmatpush.bf16.msra.mxu0 0
        %917 = vmatpush.bf16.msra.mxu0 0
        %918 = vmatpush.bf16.msra.mxu0 0
        %919 = vmatpush.bf16.msra.mxu0 %v834
        %920 = vmatpush.bf16.msra.mxu0 %v833
        %921 = vmatpush.bf16.msra.mxu0 %v832
        %922 = vmatpush.bf16.msra.mxu0 %v831
        %923 = vmatmul.bf16.gmra.mxu0 %v904
        %v924 = vpop.f32.mrf.mxu0
        %v925 = vadd.f32 %v846, %v924
        %v926 = vpop.f32.mrf.mxu0
        %v927 = vadd.f32 %v851, %v926
        %928 = vmatmul.bf16.gmra.mxu0 %v907
        %v929 = vpop.f32.mrf.mxu0
        %v930 = vadd.f32 %v856, %v929
        %v931 = vpop.f32.mrf.mxu0
        %v932 = vadd.f32 %v861, %v931
        %933 = vmatmul.bf16.gmra.mxu0 %v910
        %v934 = vpop.f32.mrf.mxu0
        %v935 = vadd.f32 %v866, %v934
        %v936 = vpop.f32.mrf.mxu0
        %v937 = vadd.f32 %v871, %v936
        %938 = vmatmul.bf16.gmra.mxu0 %v913
        %v939 = vpop.f32.mrf.mxu0
        %v940 = vadd.f32 %v876, %v939
        %v941 = vpop.f32.mrf.mxu0
        %v942 = vadd.f32 %v881, %v941
        %943 = vdwg.mxu0
        %v944 = vxor.u32 %v925, 2147483648
        %v945 = vxor.u32 %v927, 2147483648
        %v946 = vxor.u32 %v930, 2147483648
        %v947 = vxor.u32 %v932, 2147483648
        %v948 = vxor.u32 %v935, 2147483648
        %v949 = vxor.u32 %v937, 2147483648
        %v950 = vxor.u32 %v940, 2147483648
        %v951 = vxor.u32 %v942, 2147483648
        %v952 = vmul.f32 %v944, 1.442695
        %v953 = vpow.pop %v952
        %v954 = vmul.f32 %v945, 1.442695
        %v955 = vpow.pop %v954
        %v956 = vmul.f32 %v946, 1.442695
        %v957 = vpow.pop %v956
        %v958 = vmul.f32 %v947, 1.442695
        %v959 = vpow.pop %v958
        %v960 = vmul.f32 %v948, 1.442695
        %v961 = vpow.pop %v960
        %v962 = vmul.f32 %v949, 1.442695
        %v963 = vpow.pop %v962
        %v964 = vmul.f32 %v950, 1.442695
        %v965 = vpow.pop %v964
        %v966 = vmul.f32 %v951, 1.442695
        %v967 = vpow.pop %v966
        %v968 = vadd.f32 %v953, 1.0
        %v969 = vadd.f32 %v955, 1.0
        %v970 = vadd.f32 %v957, 1.0
        %v971 = vadd.f32 %v959, 1.0
        %v972 = vadd.f32 %v961, 1.0
        %v973 = vadd.f32 %v963, 1.0
        %v974 = vadd.f32 %v965, 1.0
        %v975 = vadd.f32 %v967, 1.0
        %v976 = vrcp.pop %v968
        %v977 = vmul.f32 %v968, %v976
        %v978 = vsub.f32 1.0, %v977
        %v979 = vmul.f32 %v976, %v978
        %v980 = vadd.f32 %v976, %v979
        %vm981 = vweird.f32 %v968
        %vm982 = vweird.f32 %v976
        %vm983 = vmor %vm981, %vm982
        %v984 = vsel %vm983, %v976, %v980
        %v985 = vand.u32 2147483647, %v968
        %vm986 = vcmp.eq.f32.partialorder %v985, 8.507059e+37
        %v987 = vand.u32 %v968, 2147483648
        %v988 = vor.u32 1.1754944e-38, %v987
        %v989 = vsel %vm986, %v988, %v984
        %v990 = vmul.f32 1.0, %v989
        %v991 = vrcp.pop %v969
        %v992 = vmul.f32 %v969, %v991
        %v993 = vsub.f32 1.0, %v992
        %v994 = vmul.f32 %v991, %v993
        %v995 = vadd.f32 %v991, %v994
        %vm996 = vweird.f32 %v969
        %vm997 = vweird.f32 %v991
        %vm998 = vmor %vm996, %vm997
        %v999 = vsel %vm998, %v991, %v995
        %v1000 = vand.u32 2147483647, %v969
        %vm1001 = vcmp.eq.f32.partialorder %v1000, 8.507059e+37
        %v1002 = vand.u32 %v969, 2147483648
        %v1003 = vor.u32 1.1754944e-38, %v1002
        %v1004 = vsel %vm1001, %v1003, %v999
        %v1005 = vmul.f32 1.0, %v1004
        %v1006 = vrcp.pop %v970
        %v1007 = vmul.f32 %v970, %v1006
        %v1008 = vsub.f32 1.0, %v1007
        %v1009 = vmul.f32 %v1006, %v1008
        %v1010 = vadd.f32 %v1006, %v1009
        %vm1011 = vweird.f32 %v970
        %vm1012 = vweird.f32 %v1006
        %vm1013 = vmor %vm1011, %vm1012
        %v1014 = vsel %vm1013, %v1006, %v1010
        %v1015 = vand.u32 2147483647, %v970
        %vm1016 = vcmp.eq.f32.partialorder %v1015, 8.507059e+37
        %v1017 = vand.u32 %v970, 2147483648
        %v1018 = vor.u32 1.1754944e-38, %v1017
        %v1019 = vsel %vm1016, %v1018, %v1014
        %v1020 = vmul.f32 1.0, %v1019
        %v1021 = vrcp.pop %v971
        %v1022 = vmul.f32 %v971, %v1021
        %v1023 = vsub.f32 1.0, %v1022
        %v1024 = vmul.f32 %v1021, %v1023
        %v1025 = vadd.f32 %v1021, %v1024
        %vm1026 = vweird.f32 %v971
        %vm1027 = vweird.f32 %v1021
        %vm1028 = vmor %vm1026, %vm1027
        %v1029 = vsel %vm1028, %v1021, %v1025
        %v1030 = vand.u32 2147483647, %v971
        %vm1031 = vcmp.eq.f32.partialorder %v1030, 8.507059e+37
        %v1032 = vand.u32 %v971, 2147483648
        %v1033 = vor.u32 1.1754944e-38, %v1032
        %v1034 = vsel %vm1031, %v1033, %v1029
        %v1035 = vmul.f32 1.0, %v1034
        %v1036 = vrcp.pop %v972
        %v1037 = vmul.f32 %v972, %v1036
        %v1038 = vsub.f32 1.0, %v1037
        %v1039 = vmul.f32 %v1036, %v1038
        %v1040 = vadd.f32 %v1036, %v1039
        %vm1041 = vweird.f32 %v972
        %vm1042 = vweird.f32 %v1036
        %vm1043 = vmor %vm1041, %vm1042
        %v1044 = vsel %vm1043, %v1036, %v1040
        %v1045 = vand.u32 2147483647, %v972
        %vm1046 = vcmp.eq.f32.partialorder %v1045, 8.507059e+37
        %v1047 = vand.u32 %v972, 2147483648
        %v1048 = vor.u32 1.1754944e-38, %v1047
        %v1049 = vsel %vm1046, %v1048, %v1044
        %v1050 = vmul.f32 1.0, %v1049
        %v1051 = vrcp.pop %v973
        %v1052 = vmul.f32 %v973, %v1051
        %v1053 = vsub.f32 1.0, %v1052
        %v1054 = vmul.f32 %v1051, %v1053
        %v1055 = vadd.f32 %v1051, %v1054
        %vm1056 = vweird.f32 %v973
        %vm1057 = vweird.f32 %v1051
        %vm1058 = vmor %vm1056, %vm1057
        %v1059 = vsel %vm1058, %v1051, %v1055
        %v1060 = vand.u32 2147483647, %v973
        %vm1061 = vcmp.eq.f32.partialorder %v1060, 8.507059e+37
        %v1062 = vand.u32 %v973, 2147483648
        %v1063 = vor.u32 1.1754944e-38, %v1062
        %v1064 = vsel %vm1061, %v1063, %v1059
        %v1065 = vmul.f32 1.0, %v1064
        %v1066 = vrcp.pop %v974
        %v1067 = vmul.f32 %v974, %v1066
        %v1068 = vsub.f32 1.0, %v1067
        %v1069 = vmul.f32 %v1066, %v1068
        %v1070 = vadd.f32 %v1066, %v1069
        %vm1071 = vweird.f32 %v974
        %vm1072 = vweird.f32 %v1066
        %vm1073 = vmor %vm1071, %vm1072
        %v1074 = vsel %vm1073, %v1066, %v1070
        %v1075 = vand.u32 2147483647, %v974
        %vm1076 = vcmp.eq.f32.partialorder %v1075, 8.507059e+37
        %v1077 = vand.u32 %v974, 2147483648
        %v1078 = vor.u32 1.1754944e-38, %v1077
        %v1079 = vsel %vm1076, %v1078, %v1074
        %v1080 = vmul.f32 1.0, %v1079
        %v1081 = vrcp.pop %v975
        %v1082 = vmul.f32 %v975, %v1081
        %v1083 = vsub.f32 1.0, %v1082
        %v1084 = vmul.f32 %v1081, %v1083
        %v1085 = vadd.f32 %v1081, %v1084
        %vm1086 = vweird.f32 %v975
        %vm1087 = vweird.f32 %v1081
        %vm1088 = vmor %vm1086, %vm1087
        %v1089 = vsel %vm1088, %v1081, %v1085
        %v1090 = vand.u32 2147483647, %v975
        %vm1091 = vcmp.eq.f32.partialorder %v1090, 8.507059e+37
        %v1092 = vand.u32 %v975, 2147483648
        %v1093 = vor.u32 1.1754944e-38, %v1092
        %v1094 = vsel %vm1091, %v1093, %v1089
        %v1095 = vmul.f32 1.0, %v1094
        %v1096 = vmul.f32 %v925, %v990
        %v1097 = vmul.f32 %v927, %v1005
        %v1098 = vmul.f32 %v930, %v1020
        %v1099 = vmul.f32 %v932, %v1035
        %v1100 = vmul.f32 %v935, %v1050
        %v1101 = vmul.f32 %v937, %v1065
        %v1102 = vmul.f32 %v940, %v1080
        %v1103 = vmul.f32 %v942, %v1095
        %v1104 = vld [vmem:[%s505] sm:$0xff]
        %v1105 = vld [vmem:[%s505 + $0x8] sm:$0xff]
        %v1106 = vld [vmem:[%s505 + $0x10] sm:$0xff]
        %v1107 = vld [vmem:[%s505 + $0x18] sm:$0xff]
        %v1108 = vld [vmem:[%s505 + $0x20] sm:$0xff]
        %v1109 = vld [vmem:[%s505 + $0x28] sm:$0xff]
        %v1110 = vld [vmem:[%s505 + $0x30] sm:$0xff]
        %v1111 = vld [vmem:[%s505 + $0x38] sm:$0xff]
        %1113 = vset.pattern.permute.xlu0 0
        %1114 = vperm.xlu0 %1113, %v1104
        %v1115 = vpop.permute.xlu0 %1114
        %1118 = vset.pattern.permute.xlu0 0
        %1119 = vperm.xlu0 %1118, %v1105
        %v1120 = vpop.permute.xlu0 %1119
        %1123 = vset.pattern.permute.xlu0 0
        %1124 = vperm.xlu0 %1123, %v1106
        %v1125 = vpop.permute.xlu0 %1124
        %1128 = vset.pattern.permute.xlu0 0
        %1129 = vperm.xlu0 %1128, %v1107
        %v1130 = vpop.permute.xlu0 %1129
        %1133 = vset.pattern.permute.xlu0 0
        %1134 = vperm.xlu0 %1133, %v1108
        %v1135 = vpop.permute.xlu0 %1134
        %1138 = vset.pattern.permute.xlu0 0
        %1139 = vperm.xlu0 %1138, %v1109
        %v1140 = vpop.permute.xlu0 %1139
        %1143 = vset.pattern.permute.xlu0 0
        %1144 = vperm.xlu0 %1143, %v1110
        %v1145 = vpop.permute.xlu0 %1144
        %1148 = vset.pattern.permute.xlu0 0
        %1149 = vperm.xlu0 %1148, %v1111
        %v1150 = vpop.permute.xlu0 %1149
        %v1152 = vmul.f32 %v1096, %v1115
        %v1153 = vmul.f32 %v1097, %v1120
        %v1154 = vmul.f32 %v1098, %v1125
        %v1155 = vmul.f32 %v1099, %v1130
        %v1156 = vmul.f32 %v1100, %v1135
        %v1157 = vmul.f32 %v1101, %v1140
        %v1158 = vmul.f32 %v1102, %v1145
        %v1159 = vmul.f32 %v1103, %v1150
        %v1160 = vadd.f32 %v1152, %v1153
        %v1161 = vadd.f32 %v1160, %v1154
        %v1162 = vadd.f32 %v1161, %v1155
        %v1163 = vadd.f32 %v1162, %v1156
        %v1164 = vadd.f32 %v1163, %v1157
        %v1165 = vadd.f32 %v1164, %v1158
        %v1166 = vadd.f32 %v1165, %v1159
        %v1167 = vrot.slane %v1166, 4
        %v1168 = vadd.f32 %v1166, %v1167
        %v1169 = vrot.slane %v1168, 2
        %v1170 = vadd.f32 %v1168, %v1169
        %v1171 = vrot.slane %v1170, 1
        %v1172 = vadd.f32 %v1170, %v1171
        %v1173 = vld [vmem:[%s510] sm:$0x1]
        %1175 = vset.pattern.permute.xlu0 0
        %1176 = vperm.xlu0 %1175, %v1173
        %v1177 = vpop.permute.xlu0 %1176
        %v1179 = vperm.slane %v1177, 0
        %v1180 = vadd.f32 %v1172, %v1179
        %1181 = vst [vmem:[%s471] sm:$0x1] %v1180
        %s1182 = sand.u32 %s232, 1
        %s1183 = scalar_lea.sflag [#allocation6], %s1182
        %s1184 = sand.u32 %s232, 1
        %s1185 = scalar_lea.vmem [#allocation5], %s1184
        // Predicated region
        $region90: #{tpu_custom_call.1} parent=84 // pred_check
          %p1186 = pneg %p242
        $region91: #{tpu_custom_call.1} parent=84 // pred_check_branch
          %1188 = sbr.rel (%p1186) target = $region93
        $region92: #{tpu_custom_call.1} parent=84 // pred_region
          %1190 = vsyncadd %s1183, 0
          %s1191 = scalar_lea.hbm %s8, %s30
          %s1193 = sshll.u32 %s1185, 4
          %s1194 = int_to_ptr.vmem [resolvable:$true] %s1193
          %s1195 = sshll.u32 %s1191, 4
          %s1196 = int_to_ptr.hbm [resolvable:$true] %s1195
          %1198 = dma.vmem_to_hbm [thread:$0]  %s1194, 16, %s1196, %s1183
        $region93: #{tpu_custom_call.1} parent=84 // pred_fallthru
          _
      $region85: #{tpu_custom_call.1} parent=5 // pred_fallthru
        _
      %p1199 = scmp.le.s32.totalorder 2, %s25
      // Predicated region
      $region94: #{tpu_custom_call.1} parent=5 // pred_check
        %p1200 = pneg %p1199
      $region95: #{tpu_custom_call.1} parent=5 // pred_check_branch
        %1202 = sbr.rel (%p1200) target = $region97
      $region96: #{tpu_custom_call.1} parent=5 // pred_region
        %s1203 = ssub.s32 %s25, 2
        // Predicated region
        $region98: #{tpu_custom_call.1} parent=96 // pred_check
          %p1204 = pneg %p248
        $region99: #{tpu_custom_call.1} parent=96 // pred_check_branch
          %1206 = sbr.rel (%p1204) target = $region101
        $region100: #{tpu_custom_call.1} parent=96 // pred_region
          %s1207 = sand.u32 %s233, 1
          %s1208 = scalar_lea.sflag [#allocation6], %s1207
          %s1209 = sand.u32 %s233, 1
          %s1210 = scalar_lea.vmem [#allocation5], %s1209
          %1212 = dma.done %s1208, 16
        $region101: #{tpu_custom_call.1} parent=96 // pred_fallthru
          _
      $region97: #{tpu_custom_call.1} parent=5 // pred_fallthru
        _
    $region6: #{tpu_custom_call.1} parent=1 // loop_footer
      %s29 = sadd.s32 1, %s25
    $region7: #{tpu_custom_call.1} parent=1 // loop_footer_branch
      %24 = sbr.rel target = $region3
    $region8: #{tpu_custom_call.1} parent=1 // loop_exit
      _
    %1213 = vsyncpa [#allocation6], 1
    %s1214 = scalar_lea.sflag [#allocation6], 1
    %1215 = vsyncpa %s1214, 1

</llo_original>
